<compile_context>
chip_gen: v7x
topology: tpu7x:2x2x1
jax: 0.10.0
libtpu: 0.0.40
codegen_flags: <defaults>
</compile_context>

<pallas_src>
import math

import jax
import jax.numpy as jnp
from jax import lax
from jax.experimental import pallas as pl
from jax.experimental.pallas import tpu as pltpu


def _round_up(x: int, m: int) -> int:
    return ((x + m - 1) // m) * m


def _linear_kernel(code_ref, w_ref, pred_ref, rec_ref):
    code = code_ref[...]                      # [Bp, Cin_p]
    w = w_ref[...]                            # [Cin_p, Cout_p]

    # Two chained matmuls on the MXU, f32 accumulation.
    pred_f32 = jnp.dot(code, w, preferred_element_type=jnp.float32)   # [Bp, Cout_p]

    # recover = pred @ W.T, expressed as a contraction over W's last dim so the
    # MXU is fed directly without transposing/copying W.
    rec_f32 = lax.dot_general(
        pred_f32, w,
        dimension_numbers=(((1,), (1,)), ((), ())),
        preferred_element_type=jnp.float32,
    )                                                                  # [Bp, Cin_p]

    # dropout == identity (eval mode); activation == ReLU.
    pred_ref[...] = jnp.maximum(pred_f32, 0.0).astype(pred_ref.dtype)
    rec_ref[...] = jnp.maximum(rec_f32, 0.0).astype(rec_ref.dtype)


def linear_forward(code, W):
    """code: [B, in_channel] f32; W: [in_channel, out_channel] f32.

    Returns (pred [B, out_channel], recover [B, in_channel]).
    """
    B, cin = code.shape
    cin_w, cout = W.shape
    assert cin == cin_w

    # Lane-dense padding: last dims -> multiples of 128, sublane dim -> multiple of 8.
    # Zero padding is inert: padded W columns/rows are zero, so both matmul
    # results are exact in the unpadded region and zero elsewhere.
    Bp = _round_up(B, 8)
    cin_p = _round_up(cin, 128)
    cout_p = _round_up(cout, 128)

    code_p = jnp.zeros((Bp, cin_p), code.dtype).at[:B, :cin].set(code)
    W_p = jnp.zeros((cin_p, cout_p), W.dtype).at[:cin, :cout].set(W)

    itemsize = jnp.dtype(code.dtype).itemsize
    flops = 2 * Bp * cin_p * cout_p + 2 * Bp * cout_p * cin_p
    bytes_accessed = itemsize * (
        Bp * cin_p            # code in
        + cin_p * cout_p      # W in
        + Bp * cout_p         # pred out
        + Bp * cin_p          # recover out
    )

    pred_p, rec_p = pl.pallas_call(
        _linear_kernel,
        out_shape=(
            jax.ShapeDtypeStruct((Bp, cout_p), code.dtype),   # pred (padded)
            jax.ShapeDtypeStruct((Bp, cin_p), code.dtype),    # recover (padded)
        ),
        grid_spec=pltpu.PrefetchScalarGridSpec(
            num_scalar_prefetch=0,
            grid=(1,),
            in_specs=[
                pl.BlockSpec((Bp, cin_p), lambda i: (0, 0)),
                pl.BlockSpec((cin_p, cout_p), lambda i: (0, 0)),
            ],
            out_specs=[
                pl.BlockSpec((Bp, cout_p), lambda i: (0, 0)),
                pl.BlockSpec((Bp, cin_p), lambda i: (0, 0)),
            ],
        ),
        compiler_params=pltpu.CompilerParams(
            dimension_semantics=("arbitrary",),
        ),
        cost_estimate=pl.CostEstimate(
            flops=flops, transcendentals=0, bytes_accessed=bytes_accessed
        ),
    )(code_p, W_p)

    # Slice the padding back off.
    return pred_p[:B, :cout], rec_p[:B, :cin]


if __name__ == "__main__":
    # Small shapes implied by the module: batch=8, in_channel=32, out_channel=16.
    B, IN_CH, OUT_CH = 8, 32, 16

    key = jax.random.PRNGKey(0)
    k_code, k_w = jax.random.split(key)

    code = jax.random.normal(k_code, (B, IN_CH), dtype=jnp.float32)

    # Deterministic init matching reset_params(): U(-stdv, stdv), stdv = 1/sqrt(out_channel)
    stdv = 1.0 / math.sqrt(OUT_CH)
    W = jax.random.uniform(k_w, (IN_CH, OUT_CH), dtype=jnp.float32,
                           minval=-stdv, maxval=stdv)

    pred, recover = linear_forward(code, W)
    jax.block_until_ready((pred, recover))

    # Reference check in plain JAX (ReLU activation, dropout = identity).
    pred_ref = jnp.maximum(code @ W, 0.0)
    rec_ref = jnp.maximum((code @ W) @ W.T, 0.0)
    assert pred.shape == (B, OUT_CH) and recover.shape == (B, IN_CH)
    assert jnp.allclose(pred, pred_ref, atol=1e-5, rtol=1e-5)
    assert jnp.allclose(recover, rec_ref, atol=1e-5, rtol=1e-5)

    print("KERNEL_OK")
</pallas_src>

<mosaic_0001>
module attributes {stable_mosaic.version = 11 : i64} {
  func.func @_linear_kernel(%arg0: i32, %arg1: memref<8x128xf32, #tpu.memory_space<vmem>>, %arg2: memref<128x128xf32, #tpu.memory_space<vmem>>, %arg3: memref<8x128xf32, #tpu.memory_space<vmem>>, %arg4: memref<8x128xf32, #tpu.memory_space<vmem>>) attributes {dimension_semantics = [#tpu.dimension_semantics<arbitrary>], iteration_bounds = array<i64: 1>, scalar_prefetch = 0 : i64, scratch_operands = 0 : i64, tpu.core_type = #tpu.core_type<tc>, window_params = [{pipeline_mode = #tpu.pipeline_mode<synchronous>, transform_indices = @transform_0, window_bounds = array<i64: 8, 128>}, {pipeline_mode = #tpu.pipeline_mode<synchronous>, transform_indices = @transform_1, window_bounds = array<i64: 128, 128>}, {pipeline_mode = #tpu.pipeline_mode<synchronous>, transform_indices = @transform_2, window_bounds = array<i64: 8, 128>}, {pipeline_mode = #tpu.pipeline_mode<synchronous>, transform_indices = @transform_3, window_bounds = array<i64: 8, 128>}]} {
    %c0 = arith.constant 0 : index
    %c0_0 = arith.constant 0 : index
    %0 = vector.load %arg1[%c0, %c0_0] : memref<8x128xf32, #tpu.memory_space<vmem>>, vector<8x128xf32>
    %c0_1 = arith.constant 0 : index
    %c0_2 = arith.constant 0 : index
    %1 = vector.load %arg2[%c0_1, %c0_2] : memref<128x128xf32, #tpu.memory_space<vmem>>, vector<128x128xf32>
    %cst = arith.constant dense<0.000000e+00> : vector<8x128xf32>
    %2 = tpu.matmul %0, %1, %cst {dimension_numbers = #tpu.dot_dimension_numbers<[1], [0], [0], [1], [0, 0, 1, 1], [], []>} : vector<8x128xf32>, vector<128x128xf32>, vector<8x128xf32> -> vector<8x128xf32>
    %cst_3 = arith.constant dense<0.000000e+00> : vector<8x128xf32>
    %3 = tpu.matmul %2, %1, %cst_3 {dimension_numbers = #tpu.dot_dimension_numbers<[1], [1], [0], [0], [0, 0, 1, 0], [], []>} : vector<8x128xf32>, vector<128x128xf32>, vector<8x128xf32> -> vector<8x128xf32>
    %cst_4 = arith.constant 0.000000e+00 : f32
    %4 = vector.broadcast %cst_4 : f32 to vector<8x128xf32>
    %5 = arith.maximumf %2, %4 : vector<8x128xf32>
    %c0_5 = arith.constant 0 : index
    %c0_6 = arith.constant 0 : index
    %6 = vector.load %arg3[%c0_5, %c0_6] : memref<8x128xf32, #tpu.memory_space<vmem>>, vector<8x128xf32>
    tpu.vector_store %arg3[%c0_5, %c0_6], %5 {strides = array<i32>} : memref<8x128xf32, #tpu.memory_space<vmem>>, vector<8x128xf32>,
    %cst_7 = arith.constant 0.000000e+00 : f32
    %7 = vector.broadcast %cst_7 : f32 to vector<8x128xf32>
    %8 = arith.maximumf %3, %7 : vector<8x128xf32>
    %c0_8 = arith.constant 0 : index
    %c0_9 = arith.constant 0 : index
    %9 = vector.load %arg4[%c0_8, %c0_9] : memref<8x128xf32, #tpu.memory_space<vmem>>, vector<8x128xf32>
    tpu.vector_store %arg4[%c0_8, %c0_9], %8 {strides = array<i32>} : memref<8x128xf32, #tpu.memory_space<vmem>>, vector<8x128xf32>,
    return
  }
  func.func @transform_0(%arg0: i32) -> (i32, i32) {
    %c0_i32 = arith.constant 0 : i32
    %c0_i32_0 = arith.constant 0 : i32
    %c0_i32_1 = arith.constant 0 : i32
    return %c0_i32, %c0_i32_0 : i32, i32
  }
  func.func @transform_1(%arg0: i32) -> (i32, i32) {
    %c0_i32 = arith.constant 0 : i32
    %c0_i32_0 = arith.constant 0 : i32
    %c0_i32_1 = arith.constant 0 : i32
    return %c0_i32, %c0_i32_0 : i32, i32
  }
  func.func @transform_2(%arg0: i32) -> (i32, i32) {
    %c0_i32 = arith.constant 0 : i32
    %c0_i32_0 = arith.constant 0 : i32
    %c0_i32_1 = arith.constant 0 : i32
    return %c0_i32, %c0_i32_0 : i32, i32
  }
  func.func @transform_3(%arg0: i32) -> (i32, i32) {
    %c0_i32 = arith.constant 0 : i32
    %c0_i32_0 = arith.constant 0 : i32
    %c0_i32_1 = arith.constant 0 : i32
    return %c0_i32, %c0_i32_0 : i32, i32
  }
}

</mosaic_0001>

<llo_original>
// kernel: tpu_custom_call.1
$region0: #{tpu_custom_call.1}
  #allocation0 [shape = 'u32[]', space=smem, size = 0x4, offset = 0x4, fixed_abs, tag = 'smem constant byte address 0x4 - core index']
  #allocation1 [shape = 'u32[144,128]{1,0:T(1,128)}', space=vmem, size = 0x12000, scoped, tag = 'internal scratch']
  %s0 = inlined_call_operand.hbm [shape: f32[8,128], index: 0, kind: input, shape index: {}]
  %s1 = inlined_call_operand.hbm [shape: f32[128,128], index: 1, kind: input, shape index: {}]
  %s2 = inlined_call_operand.hbm [shape: f32[8,128], index: 2, kind: output, shape index: {0}]
  %s3 = inlined_call_operand.hbm [shape: f32[8,128], index: 3, kind: output, shape index: {1}]
  %4 = xla_tuple %s2, %s3
  %s5 = sld [smem:[#allocation0]]
  $region34: #{tpu_custom_call.1} parent=0
    _
  %s7 = ssub.s32 1, %s5
  %s8 = scalar_select 0, %s7, %s5
  $region1: #{tpu_custom_call.1} parent=0
    #allocation2 [shape = 'u8[4096]{0}', space=vmem, size = 0x1000, scoped, tag = 'input window, operand 0, single buffered']
    #allocation3 [shape = 's32[1]{0}', space=sflag, size = 0x4, scoped, tag = 'scoped memory for tpu_custom_call.1']
    #allocation4 [shape = 's32[1]{0}', space=sflag, size = 0x4, scoped, tag = 'scoped memory for tpu_custom_call.1']
    #allocation5 [shape = 'u8[65536]{0}', space=vmem, size = 0x10000, scoped, tag = 'input window, operand 1, single buffered']
    #allocation6 [shape = 's32[1]{0}', space=sflag, size = 0x4, scoped, tag = 'scoped memory for tpu_custom_call.1']
    #allocation7 [shape = 'u8[4096]{0}', space=vmem, size = 0x1000, scoped, tag = 'output window, operand 0, single buffered']
    #allocation8 [shape = 'u8[4096]{0}', space=vmem, size = 0x1000, scoped, tag = 'output window, operand 1, single buffered']
    #allocation9 [shape = 's32[1]{0}', space=sflag, size = 0x4, scoped, tag = 'scoped memory for tpu_custom_call.1']
    %9 = vsyncpa [#allocation3], 0
    %10 = vsyncpa [#allocation6], 0
    %11 = vsyncpa [#allocation4], 0
    %12 = vsyncpa [#allocation9], 0
    // Predicated region
    $region2: #{tpu_custom_call.1} parent=1 // pred_check
      _
    $region3: #{tpu_custom_call.1} parent=1 // pred_check_branch
      %14 = sbr.rel (0) target = $region5
    $region4: #{tpu_custom_call.1} parent=1 // pred_region
      %s16 = ssub.s32 128, 128
      %17 = vsyncadd [#allocation3], %s16
      %s19 = sshll.u32 [#allocation2], 4
      %s20 = int_to_ptr.vmem [resolvable:$true] %s19
      %22 = dma.hbm_to_vmem [thread:$0]  %s0, 128, %s20, [#allocation3]
    $region5: #{tpu_custom_call.1} parent=1 // pred_fallthru
      _
    // Predicated region
    $region6: #{tpu_custom_call.1} parent=1 // pred_check
      _
    $region7: #{tpu_custom_call.1} parent=1 // pred_check_branch
      %24 = sbr.rel (0) target = $region9
    $region8: #{tpu_custom_call.1} parent=1 // pred_region
      %s26 = ssub.s32 2048, 2048
      %27 = vsyncadd [#allocation6], %s26
      %s28 = sshll.u32 [#allocation5], 4
      %s29 = int_to_ptr.vmem [resolvable:$true] %s28
      %34 = dma.hbm_to_vmem [thread:$0]  %s1, 2048, %s29, [#allocation6], 128, 128, 8
    $region9: #{tpu_custom_call.1} parent=1 // pred_fallthru
      _
    // Predicated region
    $region10: #{tpu_custom_call.1} parent=1 // pred_check
      _
    $region11: #{tpu_custom_call.1} parent=1 // pred_check_branch
      %36 = sbr.rel (0) target = $region13
    $region12: #{tpu_custom_call.1} parent=1 // pred_region
      %37 = dma.done [#allocation3], 128
    $region13: #{tpu_custom_call.1} parent=1 // pred_fallthru
      _
    // Predicated region
    $region14: #{tpu_custom_call.1} parent=1 // pred_check
      _
    $region15: #{tpu_custom_call.1} parent=1 // pred_check_branch
      %39 = sbr.rel (0) target = $region17
    $region16: #{tpu_custom_call.1} parent=1 // pred_region
      %40 = dma.done [#allocation6], 2048
    $region17: #{tpu_custom_call.1} parent=1 // pred_fallthru
      _
    %v41 = vld [vmem:[#allocation2] sm:$0xff]
    %v42 = vld [vmem:[#allocation5] sm:$0xff]
    %v43 = vld [vmem:[#allocation5 + $0x8] sm:$0xff]
    %v44 = vld [vmem:[#allocation5 + $0x10] sm:$0xff]
    %v45 = vld [vmem:[#allocation5 + $0x18] sm:$0xff]
    %v46 = vld [vmem:[#allocation5 + $0x20] sm:$0xff]
    %v47 = vld [vmem:[#allocation5 + $0x28] sm:$0xff]
    %v48 = vld [vmem:[#allocation5 + $0x30] sm:$0xff]
    %v49 = vld [vmem:[#allocation5 + $0x38] sm:$0xff]
    %v50 = vld [vmem:[#allocation5 + $0x40] sm:$0xff]
    %v51 = vld [vmem:[#allocation5 + $0x48] sm:$0xff]
    %v52 = vld [vmem:[#allocation5 + $0x50] sm:$0xff]
    %v53 = vld [vmem:[#allocation5 + $0x58] sm:$0xff]
    %v54 = vld [vmem:[#allocation5 + $0x60] sm:$0xff]
    %v55 = vld [vmem:[#allocation5 + $0x68] sm:$0xff]
    %v56 = vld [vmem:[#allocation5 + $0x70] sm:$0xff]
    %v57 = vld [vmem:[#allocation5 + $0x78] sm:$0xff]
    %58 = vmatprep.subr.mxu0 0.0
    %59 = vmatpush1.msra.mxu0 %v42
    %60 = vmatprep.subr.mxu0 0.0
    %61 = vmatpush1.msra.mxu0 %v43
    %62 = vmatprep.subr.mxu0 0.0
    %63 = vmatpush1.msra.mxu0 %v44
    %64 = vmatprep.subr.mxu0 0.0
    %65 = vmatpush1.msra.mxu0 %v45
    %66 = vmatprep.subr.mxu0 0.0
    %67 = vmatpush1.msra.mxu0 %v46
    %68 = vmatprep.subr.mxu0 0.0
    %69 = vmatpush1.msra.mxu0 %v47
    %70 = vmatprep.subr.mxu0 0.0
    %71 = vmatpush1.msra.mxu0 %v48
    %72 = vmatprep.subr.mxu0 0.0
    %73 = vmatpush1.msra.mxu0 %v49
    %74 = vmatprep.subr.mxu0 0.0
    %75 = vmatpush1.msra.mxu0 %v50
    %76 = vmatprep.subr.mxu0 0.0
    %77 = vmatpush1.msra.mxu0 %v51
    %78 = vmatprep.subr.mxu0 0.0
    %79 = vmatpush1.msra.mxu0 %v52
    %80 = vmatprep.subr.mxu0 0.0
    %81 = vmatpush1.msra.mxu0 %v53
    %82 = vmatprep.subr.mxu0 0.0
    %83 = vmatpush1.msra.mxu0 %v54
    %84 = vmatprep.subr.mxu0 0.0
    %85 = vmatpush1.msra.mxu0 %v55
    %86 = vmatprep.subr.mxu0 0.0
    %87 = vmatpush1.msra.mxu0 %v56
    %88 = vmatprep.subr.mxu0 0.0
    %89 = vmatpush1.msra.mxu0 %v57
    %90 = vmatprep.subr.mxu0 0.0
    %91 = vmatpush1.msra.mxu0 0.0
    %92 = vmatprep.subr.mxu0 0.0
    %93 = vmatpush1.msra.mxu0 0.0
    %94 = vmatprep.subr.mxu0 0.0
    %95 = vmatpush1.msra.mxu0 0.0
    %96 = vmatprep.subr.mxu0 0.0
    %97 = vmatpush1.msra.mxu0 0.0
    %98 = vmatprep.subr.mxu0 0.0
    %99 = vmatpush1.msra.mxu0 0.0
    %100 = vmatprep.subr.mxu0 0.0
    %101 = vmatpush1.msra.mxu0 0.0
    %102 = vmatprep.subr.mxu0 0.0
    %103 = vmatpush1.msra.mxu0 0.0
    %104 = vmatprep.subr.mxu0 0.0
    %105 = vmatpush1.msra.mxu0 0.0
    %106 = vmatprep.subr.mxu0 0.0
    %107 = vmatpush1.msra.mxu0 0.0
    %108 = vmatprep.subr.mxu0 0.0
    %109 = vmatpush1.msra.mxu0 0.0
    %110 = vmatprep.subr.mxu0 0.0
    %111 = vmatpush1.msra.mxu0 0.0
    %112 = vmatprep.subr.mxu0 0.0
    %113 = vmatpush1.msra.mxu0 0.0
    %114 = vmatprep.subr.mxu0 0.0
    %115 = vmatpush1.msra.mxu0 0.0
    %116 = vmatprep.subr.mxu0 0.0
    %117 = vmatpush1.msra.mxu0 0.0
    %118 = vmatprep.subr.mxu0 0.0
    %119 = vmatpush1.msra.mxu0 0.0
    %120 = vmatprep.subr.mxu0 0.0
    %121 = vmatpush1.msra.mxu0 0.0
    %122 = vmatprep.mubr.f32.mxu0 0.0
    %123 = vmatmul.mubr.f32.gmra.mrb[0].mxu0 %v41
    %v124 = vpop.f32.mrb[0].mxu0
    %v125 = vadd.f32 0.0, %v124
    %v126 = vpop.f32.mrb[0].mxu0
    %127 = vdwg.mxu0
    %128 = vmatprep.subr.mxu0 0.0
    %129 = vmatpush1.xpose.msra.mxu0 %v42
    %130 = vmatprep.subr.mxu0 0.0
    %131 = vmatpush1.xpose.msra.mxu0 %v43
    %132 = vmatprep.subr.mxu0 0.0
    %133 = vmatpush1.xpose.msra.mxu0 %v44
    %134 = vmatprep.subr.mxu0 0.0
    %135 = vmatpush1.xpose.msra.mxu0 %v45
    %136 = vmatprep.subr.mxu0 0.0
    %137 = vmatpush1.xpose.msra.mxu0 %v46
    %138 = vmatprep.subr.mxu0 0.0
    %139 = vmatpush1.xpose.msra.mxu0 %v47
    %140 = vmatprep.subr.mxu0 0.0
    %141 = vmatpush1.xpose.msra.mxu0 %v48
    %142 = vmatprep.subr.mxu0 0.0
    %143 = vmatpush1.xpose.msra.mxu0 %v49
    %144 = vmatprep.subr.mxu0 0.0
    %145 = vmatpush1.xpose.msra.mxu0 %v50
    %146 = vmatprep.subr.mxu0 0.0
    %147 = vmatpush1.xpose.msra.mxu0 %v51
    %148 = vmatprep.subr.mxu0 0.0
    %149 = vmatpush1.xpose.msra.mxu0 %v52
    %150 = vmatprep.subr.mxu0 0.0
    %151 = vmatpush1.xpose.msra.mxu0 %v53
    %152 = vmatprep.subr.mxu0 0.0
    %153 = vmatpush1.xpose.msra.mxu0 %v54
    %154 = vmatprep.subr.mxu0 0.0
    %155 = vmatpush1.xpose.msra.mxu0 %v55
    %156 = vmatprep.subr.mxu0 0.0
    %157 = vmatpush1.xpose.msra.mxu0 %v56
    %158 = vmatprep.subr.mxu0 0.0
    %159 = vmatpush1.xpose.msra.mxu0 %v57
    %160 = vmatprep.subr.mxu0 0.0
    %161 = vmatpush1.xpose.msra.mxu0 0.0
    %162 = vmatprep.subr.mxu0 0.0
    %163 = vmatpush1.xpose.msra.mxu0 0.0
    %164 = vmatprep.subr.mxu0 0.0
    %165 = vmatpush1.xpose.msra.mxu0 0.0
    %166 = vmatprep.subr.mxu0 0.0
    %167 = vmatpush1.xpose.msra.mxu0 0.0
    %168 = vmatprep.subr.mxu0 0.0
    %169 = vmatpush1.xpose.msra.mxu0 0.0
    %170 = vmatprep.subr.mxu0 0.0
    %171 = vmatpush1.xpose.msra.mxu0 0.0
    %172 = vmatprep.subr.mxu0 0.0
    %173 = vmatpush1.xpose.msra.mxu0 0.0
    %174 = vmatprep.subr.mxu0 0.0
    %175 = vmatpush1.xpose.msra.mxu0 0.0
    %176 = vmatprep.subr.mxu0 0.0
    %177 = vmatpush1.xpose.msra.mxu0 0.0
    %178 = vmatprep.subr.mxu0 0.0
    %179 = vmatpush1.xpose.msra.mxu0 0.0
    %180 = vmatprep.subr.mxu0 0.0
    %181 = vmatpush1.xpose.msra.mxu0 0.0
    %182 = vmatprep.subr.mxu0 0.0
    %183 = vmatpush1.xpose.msra.mxu0 0.0
    %184 = vmatprep.subr.mxu0 0.0
    %185 = vmatpush1.xpose.msra.mxu0 0.0
    %186 = vmatprep.subr.mxu0 0.0
    %187 = vmatpush1.xpose.msra.mxu0 0.0
    %188 = vmatprep.subr.mxu0 0.0
    %189 = vmatpush1.xpose.msra.mxu0 0.0
    %190 = vmatprep.subr.mxu0 0.0
    %191 = vmatpush1.xpose.msra.mxu0 0.0
    %192 = vmatprep.mubr.f32.mxu0 0.0
    %193 = vmatmul.mubr.f32.gmra.mrb[0].mxu0 %v125
    %v194 = vpop.f32.mrb[0].mxu0
    %v195 = vadd.f32 0.0, %v194
    %v196 = vpop.f32.mrb[0].mxu0
    %197 = vdwg.mxu0
    %v198 = vmax.f32 %v125, 0.0
    %199 = vst [vmem:[#allocation7] sm:$0xff] %v198
    %v200 = vmax.f32 %v195, 0.0
    %201 = vst [vmem:[#allocation8] sm:$0xff] %v200
    // Predicated region
    $region18: #{tpu_custom_call.1} parent=1 // pred_check
      _
    $region19: #{tpu_custom_call.1} parent=1 // pred_check_branch
      %203 = sbr.rel (0) target = $region21
    $region20: #{tpu_custom_call.1} parent=1 // pred_region
      %s205 = ssub.s32 128, 128
      %206 = vsyncadd [#allocation4], %s205
      %s208 = sshll.u32 [#allocation7], 4
      %s209 = int_to_ptr.vmem [resolvable:$true] %s208
      %211 = dma.vmem_to_hbm [thread:$0]  %s209, 128, %s2, [#allocation4]
    $region21: #{tpu_custom_call.1} parent=1 // pred_fallthru
      _
    // Predicated region
    $region22: #{tpu_custom_call.1} parent=1 // pred_check
      _
    $region23: #{tpu_custom_call.1} parent=1 // pred_check_branch
      %213 = sbr.rel (0) target = $region25
    $region24: #{tpu_custom_call.1} parent=1 // pred_region
      %s215 = ssub.s32 128, 128
      %216 = vsyncadd [#allocation9], %s215
      %s218 = sshll.u32 [#allocation8], 4
      %s219 = int_to_ptr.vmem [resolvable:$true] %s218
      %221 = dma.vmem_to_hbm [thread:$0]  %s219, 128, %s3, [#allocation9]
    $region25: #{tpu_custom_call.1} parent=1 // pred_fallthru
      _
    // Predicated region
    $region26: #{tpu_custom_call.1} parent=1 // pred_check
      _
    $region27: #{tpu_custom_call.1} parent=1 // pred_check_branch
      %223 = sbr.rel (0) target = $region29
    $region28: #{tpu_custom_call.1} parent=1 // pred_region
      %224 = dma.done [#allocation4], 128
    $region29: #{tpu_custom_call.1} parent=1 // pred_fallthru
      _
    // Predicated region
    $region30: #{tpu_custom_call.1} parent=1 // pred_check
      _
    $region31: #{tpu_custom_call.1} parent=1 // pred_check_branch
      %226 = sbr.rel (0) target = $region33
    $region32: #{tpu_custom_call.1} parent=1 // pred_region
      %227 = dma.done [#allocation9], 128
    $region33: #{tpu_custom_call.1} parent=1 // pred_fallthru
      _
    %228 = vsyncpa [#allocation3], 1
    %229 = vsyncpa [#allocation6], 1
    %230 = vsyncpa [#allocation4], 1
    %231 = vsyncpa [#allocation9], 1

</llo_original>
